<compile_context>
chip_gen: v6e
topology: v6e:2x2x1
jax: 0.10.0
libtpu: 0.0.40
codegen_flags: <defaults>
</compile_context>

<pallas_src>
import functools
import math

import jax
import jax.numpy as jnp
from jax import lax
from jax.experimental import pallas as pl
from jax.experimental.pallas import tpu as pltpu

KS = 5  # kernel_size == stride for every Conv1d in the module


def _sigmoid(y):
    # Exact sigmoid via tanh (EUP) instead of exp + VPU divide.
    return 0.5 * (jnp.tanh(0.5 * y) + 1.0)


def _fused_cnn_kernel(*refs, channels, t_out, block_b):
    """Fully fused CNN1Classifier forward for one batch block (transposed layout).

    refs = [x0, w0, b0, ..., w_{D-1}, b_{D-1}, out, act_1, ..., act_{D-1}]
      x0    : (1, KS*C0, rows0)     bf16 patches; rows = (k1..k_{D-1}, b_local, t)
      w_j   : (C_{j+1}, KS*C_j)     bf16, tap-major columns (matches x row order)
      b_j   : (C_{j+1}, 1)          f32
      out   : (1, num_classes, block_b) f32
      act_j : VMEM f32 scratch (KS*C_j, rows_j) -- the input of layer j, j=1..D-1
    """
    D = len(channels) - 1
    x0_ref = refs[0]
    w_refs = [refs[1 + 2 * j] for j in range(D)]
    b_refs = [refs[2 + 2 * j] for j in range(D)]
    out_ref = refs[1 + 2 * D]
    act_refs = list(refs[2 + 2 * D:])          # inputs to layers 1..D-1

    x = x0_ref[0]                              # (KS*C0, rows0), lane-dense rows
    for j in range(D):
        # One fat-K matmul per layer: K = KS*C_j, N = rows_j (rows on lanes).
        y = jnp.dot(w_refs[j][...], x, preferred_element_type=jnp.float32)
        y = y + b_refs[j][...]                 # f32 bias + activation
        if j < D - 1:
            y = jnp.maximum(y, 0.0)
            c_next = channels[j + 1]
            r_next = y.shape[1] // KS
            dst = act_refs[j]                  # (KS*c_next, r_next) f32 scratch
            # Restructure: tap k of the NEXT layer becomes a sublane block of its input,
            # so the next layer is again a single matmul with K = KS*c_next.
            for k in range(KS):
                dst[pl.ds(k * c_next, c_next), :] = y[:, k * r_next:(k + 1) * r_next]
            x = dst[...].astype(w_refs[j + 1].dtype)   # bf16 only at the MXU input
        else:
            y = _sigmoid(y)                    # (num_classes, block_b*t_out), t fastest
            inv_t = 1.0 / t_out
            if block_b == 1:
                res = jnp.sum(y, axis=1, keepdims=True) * inv_t
            else:
                res = jnp.sum(y.reshape(channels[D], block_b, t_out), axis=2) * inv_t
            out_ref[0] = res.astype(out_ref.dtype)


def _padded_bytes(shape, dtype):
    """Rough VMEM footprint of an array tile after (sublane, lane) padding."""
    itemsize = jnp.dtype(dtype).itemsize
    shape = tuple(int(s) for s in shape)
    if len(shape) < 2:
        shape = (1,) * (2 - len(shape)) + shape
    lead, (r, c) = shape[:-2], shape[-2:]
    sub = 8 * max(1, 4 // itemsize)            # f32: 8-row tiles, bf16: 16-row tiles
    rp = -(-r // sub) * sub
    cp = -(-c // 128) * 128
    n = 1
    for d in lead:
        n *= d
    return n * rp * cp * itemsize


def cnn1_classifier_forward(x, params, *, block_b=1, use_bf16=True):
    """x: (B, C0, L) (or (B, L)); params: list of (w (Cout, Cin, KS), b (Cout,))."""
    if x.ndim == 2:                            # mirrors the PyTorch unsqueeze_(1)
        x = x[:, None, :]
    B, C0, L = (int(s) for s in x.shape)
    D = len(params)
    t_out = L // (KS ** D)                     # == iterated floor-division by 5
    assert t_out > 0, "input length too short for the conv stack"
    assert B % block_b == 0, "block_b must divide the batch size"
    nb = B // block_b
    channels = [C0] + [int(w.shape[0]) for (w, _) in params]
    n_cls = channels[D]
    mxu_dtype = jnp.bfloat16 if use_bf16 else jnp.float32

    rows0 = (KS ** (D - 1)) * block_b * t_out  # lane extent of layer-0 input per step

    # Layer-0 patches, transposed + tap-major: (nb, KS*C0, rows0).
    # Rows are (k0, c); columns are (k1, ..., k_{D-1}, b_local, t) so every later layer's
    # 5 taps are contiguous column blocks.  bf16 cast fused into the transpose (half-size
    # HBM copy of the input reshuffle).
    x_use = x[:, :, : t_out * KS ** D].astype(mxu_dtype)
    x_r = x_use.reshape((nb, block_b, C0, t_out) + (KS,) * D)
    perm = (0, D + 3, 2) + tuple(D + 3 - m for m in range(1, D)) + (1, 3)
    p0 = jnp.transpose(x_r, perm).reshape(nb, KS * C0, rows0)

    # Weights flattened to (C_out, KS*C_in) with tap-major columns; biases as (C_out, 1).
    inputs = [p0]
    for j, (w, b) in enumerate(params):
        w_flat = jnp.transpose(w, (0, 2, 1)).reshape(channels[j + 1], KS * channels[j])
        inputs.append(w_flat.astype(mxu_dtype))
        inputs.append(b.reshape(channels[j + 1], 1).astype(jnp.float32))

    in_specs = [pl.BlockSpec((1, KS * C0, rows0), lambda i: (i, 0, 0))]
    for j in range(D):
        in_specs.append(pl.BlockSpec((channels[j + 1], KS * channels[j]), lambda i: (0, 0)))
        in_specs.append(pl.BlockSpec((channels[j + 1], 1), lambda i: (0, 0)))
    out_specs = pl.BlockSpec((1, n_cls, block_b), lambda i: (i, 0, 0))

    # f32 scratch for intermediate activations (inputs of layers 1..D-1); bf16 conversion
    # happens only at the MXU input (keeps elementwise in f32, avoids packed sub-tile stores).
    scratch_dims = [(KS * channels[j], (KS ** (D - 1 - j)) * block_b * t_out)
                    for j in range(1, D)]
    scratch_shapes = [pltpu.VMEM(s, jnp.float32) for s in scratch_dims]

    # Explicit per-step VMEM budget (double-buffered pipelined operands + scratch).
    est = 2 * _padded_bytes((KS * C0, rows0), mxu_dtype)
    for j in range(D):
        est += 2 * _padded_bytes((channels[j + 1], KS * channels[j]), mxu_dtype)
        est += 2 * _padded_bytes((channels[j + 1], 1), jnp.float32)
    est += 2 * _padded_bytes((n_cls, block_b), jnp.float32)
    for s in scratch_dims:
        est += _padded_bytes(s, jnp.float32)
    vmem_limit = int(min(max(2 * est, 8 * 1024 * 1024), 120 * 1024 * 1024))

    kernel = functools.partial(_fused_cnn_kernel, channels=tuple(channels),
                               t_out=t_out, block_b=block_b)
    out = pl.pallas_call(
        kernel,
        out_shape=jax.ShapeDtypeStruct((nb, n_cls, block_b), jnp.float32),
        grid_spec=pltpu.PrefetchScalarGridSpec(
            num_scalar_prefetch=0,
            grid=(nb,),
            in_specs=in_specs,
            out_specs=out_specs,
            scratch_shapes=scratch_shapes),
        compiler_params=pltpu.CompilerParams(
            dimension_semantics=("parallel",),
            vmem_limit_bytes=vmem_limit),
    )(*inputs)

    # (nb, n_cls, block_b) -> (B, n_cls); batch index = blk*block_b + b_local.
    return out.transpose(0, 2, 1).reshape(B, n_cls)


# ----------------------------- params / reference --------------------------------

def init_params(key, input_channel, hidden_layers, num_classes):
    ins = [input_channel] + hidden_layers
    outs = hidden_layers + [num_classes]
    params = []
    for cin, cout in zip(ins, outs):
        key, kw, kb = jax.random.split(key, 3)
        bound = 1.0 / math.sqrt(cin * KS)
        w = jax.random.uniform(kw, (cout, cin, KS), jnp.float32, -bound, bound)
        b = jax.random.uniform(kb, (cout,), jnp.float32, -bound, bound)
        params.append((w, b))
    return params


def reference_forward(x, params):
    if x.ndim == 2:
        x = x[:, None, :]
    y = x
    n = len(params)
    for i, (w, b) in enumerate(params):
        y = lax.conv_general_dilated(y, w, window_strides=(KS,), padding="VALID",
                                     dimension_numbers=("NCH", "OIH", "NCH"),
                                     precision=lax.Precision.HIGHEST)
        y = y + b[None, :, None]
        y = jnp.maximum(y, 0.0) if i < n - 1 else jax.nn.sigmoid(y)
    return jnp.mean(y, axis=2)


if __name__ == "__main__":
    input_channel = 4
    hidden_layers = [8, 16]
    num_classes = 3
    B, L = 2, 250   # lengths: 250 -> 50 -> 10 -> 2

    key = jax.random.PRNGKey(0)
    key, kx = jax.random.split(key)
    x = jax.random.normal(kx, (B, input_channel, L), jnp.float32)   # NCL, like PyTorch
    params = init_params(key, input_channel, hidden_layers, num_classes)

    fwd = jax.jit(functools.partial(cnn1_classifier_forward, block_b=1))
    out = jax.block_until_ready(fwd(x, params))

    ref = jax.block_until_ready(reference_forward(x, params))
    assert out.shape == (B, num_classes), out.shape
    # bf16 MXU inputs with f32 accumulation/bias/activation vs an f32 HIGHEST reference.
    max_err = float(jnp.max(jnp.abs(out - ref)))
    if max_err > 2e-3:
        raise AssertionError(f"mismatch vs reference: max abs err {max_err}")

    print("KERNEL_OK")
</pallas_src>

<mosaic_0001>
module attributes {stable_mosaic.version = 11 : i64} {
  func.func @_fused_cnn_kernel(%arg0: i32, %arg1: memref<1x20x50xbf16, #tpu.memory_space<vmem>>, %arg2: memref<8x20xbf16, #tpu.memory_space<vmem>>, %arg3: memref<8x1xf32, #tpu.memory_space<vmem>>, %arg4: memref<16x40xbf16, #tpu.memory_space<vmem>>, %arg5: memref<16x1xf32, #tpu.memory_space<vmem>>, %arg6: memref<3x80xbf16, #tpu.memory_space<vmem>>, %arg7: memref<3x1xf32, #tpu.memory_space<vmem>>, %arg8: memref<1x3x1xf32, #tpu.memory_space<vmem>>, %arg9: memref<40x10xf32, #tpu.memory_space<vmem>>, %arg10: memref<80x2xf32, #tpu.memory_space<vmem>>) attributes {dimension_semantics = [#tpu.dimension_semantics<parallel>], iteration_bounds = array<i64: 2>, scalar_prefetch = 0 : i64, scratch_operands = 2 : i64, tpu.core_type = #tpu.core_type<tc>, window_params = [{transform_indices = @transform_0, window_bounds = array<i64: 1, 20, 50>}, {pipeline_mode = #tpu.pipeline_mode<synchronous>, transform_indices = @transform_1, window_bounds = array<i64: 8, 20>}, {pipeline_mode = #tpu.pipeline_mode<synchronous>, transform_indices = @transform_2, window_bounds = array<i64: 8, 1>}, {pipeline_mode = #tpu.pipeline_mode<synchronous>, transform_indices = @transform_3, window_bounds = array<i64: 16, 40>}, {pipeline_mode = #tpu.pipeline_mode<synchronous>, transform_indices = @transform_4, window_bounds = array<i64: 16, 1>}, {pipeline_mode = #tpu.pipeline_mode<synchronous>, transform_indices = @transform_5, window_bounds = array<i64: 3, 80>}, {pipeline_mode = #tpu.pipeline_mode<synchronous>, transform_indices = @transform_6, window_bounds = array<i64: 3, 1>}, {transform_indices = @transform_7, window_bounds = array<i64: 1, 3, 1>}]} {
    %c0 = arith.constant 0 : index
    %c0_0 = arith.constant 0 : index
    %c0_1 = arith.constant 0 : index
    %0 = vector.load %arg1[%c0, %c0_0, %c0_1] : memref<1x20x50xbf16, #tpu.memory_space<vmem>>, vector<1x20x50xbf16>
    %1 = vector.shape_cast %0 : vector<1x20x50xbf16> to vector<20x50xbf16>
    %c0_2 = arith.constant 0 : index
    %c0_3 = arith.constant 0 : index
    %2 = vector.load %arg2[%c0_2, %c0_3] : memref<8x20xbf16, #tpu.memory_space<vmem>>, vector<8x20xbf16>
    %cst = arith.constant dense<0.000000e+00> : vector<8x50xf32>
    %3 = tpu.matmul %2, %1, %cst {dimension_numbers = #tpu.dot_dimension_numbers<[1], [0], [0], [1], [0, 0, 1, 1], [], []>} : vector<8x20xbf16>, vector<20x50xbf16>, vector<8x50xf32> -> vector<8x50xf32>
    %c0_4 = arith.constant 0 : index
    %c0_5 = arith.constant 0 : index
    %4 = vector.load %arg3[%c0_4, %c0_5] : memref<8x1xf32, #tpu.memory_space<vmem>>, vector<8x1xf32>
    %5 = vector.broadcast %4 : vector<8x1xf32> to vector<8x50xf32>
    %6 = arith.addf %3, %5 : vector<8x50xf32>
    %cst_6 = arith.constant 0.000000e+00 : f32
    %7 = vector.broadcast %cst_6 : f32 to vector<8x50xf32>
    %8 = arith.maximumf %6, %7 : vector<8x50xf32>
    %9 = vector.extract_strided_slice %8 {offsets = [0, 0], sizes = [8, 10], strides = [1, 1]} : vector<8x50xf32> to vector<8x10xf32>
    %c0_7 = arith.constant 0 : index
    %c0_8 = arith.constant 0 : index
    %10 = vector.load %arg9[%c0_7, %c0_8] : memref<40x10xf32, #tpu.memory_space<vmem>>, vector<8x10xf32>
    tpu.vector_store %arg9[%c0_7, %c0_8], %9 {strides = array<i32>} : memref<40x10xf32, #tpu.memory_space<vmem>>, vector<8x10xf32>,
    %11 = vector.extract_strided_slice %8 {offsets = [0, 10], sizes = [8, 10], strides = [1, 1]} : vector<8x50xf32> to vector<8x10xf32>
    %c8 = arith.constant 8 : index
    %c0_9 = arith.constant 0 : index
    %12 = vector.load %arg9[%c8, %c0_9] : memref<40x10xf32, #tpu.memory_space<vmem>>, vector<8x10xf32>
    tpu.vector_store %arg9[%c8, %c0_9], %11 {strides = array<i32>} : memref<40x10xf32, #tpu.memory_space<vmem>>, vector<8x10xf32>,
    %13 = vector.extract_strided_slice %8 {offsets = [0, 20], sizes = [8, 10], strides = [1, 1]} : vector<8x50xf32> to vector<8x10xf32>
    %c16 = arith.constant 16 : index
    %c0_10 = arith.constant 0 : index
    %14 = vector.load %arg9[%c16, %c0_10] : memref<40x10xf32, #tpu.memory_space<vmem>>, vector<8x10xf32>
    tpu.vector_store %arg9[%c16, %c0_10], %13 {strides = array<i32>} : memref<40x10xf32, #tpu.memory_space<vmem>>, vector<8x10xf32>,
    %15 = vector.extract_strided_slice %8 {offsets = [0, 30], sizes = [8, 10], strides = [1, 1]} : vector<8x50xf32> to vector<8x10xf32>
    %c24 = arith.constant 24 : index
    %c0_11 = arith.constant 0 : index
    %16 = vector.load %arg9[%c24, %c0_11] : memref<40x10xf32, #tpu.memory_space<vmem>>, vector<8x10xf32>
    tpu.vector_store %arg9[%c24, %c0_11], %15 {strides = array<i32>} : memref<40x10xf32, #tpu.memory_space<vmem>>, vector<8x10xf32>,
    %17 = vector.extract_strided_slice %8 {offsets = [0, 40], sizes = [8, 10], strides = [1, 1]} : vector<8x50xf32> to vector<8x10xf32>
    %c32 = arith.constant 32 : index
    %c0_12 = arith.constant 0 : index
    %18 = vector.load %arg9[%c32, %c0_12] : memref<40x10xf32, #tpu.memory_space<vmem>>, vector<8x10xf32>
    tpu.vector_store %arg9[%c32, %c0_12], %17 {strides = array<i32>} : memref<40x10xf32, #tpu.memory_space<vmem>>, vector<8x10xf32>,
    %c0_13 = arith.constant 0 : index
    %c0_14 = arith.constant 0 : index
    %19 = vector.load %arg9[%c0_13, %c0_14] : memref<40x10xf32, #tpu.memory_space<vmem>>, vector<40x10xf32>
    %20 = arith.truncf %19 : vector<40x10xf32> to vector<40x10xbf16>
    %c0_15 = arith.constant 0 : index
    %c0_16 = arith.constant 0 : index
    %21 = vector.load %arg4[%c0_15, %c0_16] : memref<16x40xbf16, #tpu.memory_space<vmem>>, vector<16x40xbf16>
    %cst_17 = arith.constant dense<0.000000e+00> : vector<16x10xf32>
    %22 = tpu.matmul %21, %20, %cst_17 {dimension_numbers = #tpu.dot_dimension_numbers<[1], [0], [0], [1], [0, 0, 1, 1], [], []>} : vector<16x40xbf16>, vector<40x10xbf16>, vector<16x10xf32> -> vector<16x10xf32>
    %c0_18 = arith.constant 0 : index
    %c0_19 = arith.constant 0 : index
    %23 = vector.load %arg5[%c0_18, %c0_19] : memref<16x1xf32, #tpu.memory_space<vmem>>, vector<16x1xf32>
    %24 = vector.broadcast %23 : vector<16x1xf32> to vector<16x10xf32>
    %25 = arith.addf %22, %24 : vector<16x10xf32>
    %cst_20 = arith.constant 0.000000e+00 : f32
    %26 = vector.broadcast %cst_20 : f32 to vector<16x10xf32>
    %27 = arith.maximumf %25, %26 : vector<16x10xf32>
    %28 = vector.extract_strided_slice %27 {offsets = [0, 0], sizes = [16, 2], strides = [1, 1]} : vector<16x10xf32> to vector<16x2xf32>
    %c0_21 = arith.constant 0 : index
    %c0_22 = arith.constant 0 : index
    %29 = vector.load %arg10[%c0_21, %c0_22] : memref<80x2xf32, #tpu.memory_space<vmem>>, vector<16x2xf32>
    tpu.vector_store %arg10[%c0_21, %c0_22], %28 {strides = array<i32>} : memref<80x2xf32, #tpu.memory_space<vmem>>, vector<16x2xf32>,
    %30 = vector.extract_strided_slice %27 {offsets = [0, 2], sizes = [16, 2], strides = [1, 1]} : vector<16x10xf32> to vector<16x2xf32>
    %c16_23 = arith.constant 16 : index
    %c0_24 = arith.constant 0 : index
    %31 = vector.load %arg10[%c16_23, %c0_24] : memref<80x2xf32, #tpu.memory_space<vmem>>, vector<16x2xf32>
    tpu.vector_store %arg10[%c16_23, %c0_24], %30 {strides = array<i32>} : memref<80x2xf32, #tpu.memory_space<vmem>>, vector<16x2xf32>,
    %32 = vector.extract_strided_slice %27 {offsets = [0, 4], sizes = [16, 2], strides = [1, 1]} : vector<16x10xf32> to vector<16x2xf32>
    %c32_25 = arith.constant 32 : index
    %c0_26 = arith.constant 0 : index
    %33 = vector.load %arg10[%c32_25, %c0_26] : memref<80x2xf32, #tpu.memory_space<vmem>>, vector<16x2xf32>
    tpu.vector_store %arg10[%c32_25, %c0_26], %32 {strides = array<i32>} : memref<80x2xf32, #tpu.memory_space<vmem>>, vector<16x2xf32>,
    %34 = vector.extract_strided_slice %27 {offsets = [0, 6], sizes = [16, 2], strides = [1, 1]} : vector<16x10xf32> to vector<16x2xf32>
    %c48 = arith.constant 48 : index
    %c0_27 = arith.constant 0 : index
    %35 = vector.load %arg10[%c48, %c0_27] : memref<80x2xf32, #tpu.memory_space<vmem>>, vector<16x2xf32>
    tpu.vector_store %arg10[%c48, %c0_27], %34 {strides = array<i32>} : memref<80x2xf32, #tpu.memory_space<vmem>>, vector<16x2xf32>,
    %36 = vector.extract_strided_slice %27 {offsets = [0, 8], sizes = [16, 2], strides = [1, 1]} : vector<16x10xf32> to vector<16x2xf32>
    %c64 = arith.constant 64 : index
    %c0_28 = arith.constant 0 : index
    %37 = vector.load %arg10[%c64, %c0_28] : memref<80x2xf32, #tpu.memory_space<vmem>>, vector<16x2xf32>
    tpu.vector_store %arg10[%c64, %c0_28], %36 {strides = array<i32>} : memref<80x2xf32, #tpu.memory_space<vmem>>, vector<16x2xf32>,
    %c0_29 = arith.constant 0 : index
    %c0_30 = arith.constant 0 : index
    %38 = vector.load %arg10[%c0_29, %c0_30] : memref<80x2xf32, #tpu.memory_space<vmem>>, vector<80x2xf32>
    %39 = arith.truncf %38 : vector<80x2xf32> to vector<80x2xbf16>
    %c0_31 = arith.constant 0 : index
    %c0_32 = arith.constant 0 : index
    %40 = vector.load %arg6[%c0_31, %c0_32] : memref<3x80xbf16, #tpu.memory_space<vmem>>, vector<3x80xbf16>
    %cst_33 = arith.constant dense<0.000000e+00> : vector<3x2xf32>
    %41 = tpu.matmul %40, %39, %cst_33 {dimension_numbers = #tpu.dot_dimension_numbers<[1], [0], [0], [1], [0, 0, 1, 1], [], []>} : vector<3x80xbf16>, vector<80x2xbf16>, vector<3x2xf32> -> vector<3x2xf32>
    %c0_34 = arith.constant 0 : index
    %c0_35 = arith.constant 0 : index
    %42 = vector.load %arg7[%c0_34, %c0_35] : memref<3x1xf32, #tpu.memory_space<vmem>>, vector<3x1xf32>
    %43 = vector.broadcast %42 : vector<3x1xf32> to vector<3x2xf32>
    %44 = arith.addf %41, %43 : vector<3x2xf32>
    %cst_36 = arith.constant 5.000000e-01 : f32
    %45 = vector.broadcast %cst_36 : f32 to vector<3x2xf32>
    %46 = arith.mulf %45, %44 : vector<3x2xf32>
    %47 = math.tanh %46 : vector<3x2xf32>
    %cst_37 = arith.constant 1.000000e+00 : f32
    %48 = vector.broadcast %cst_37 : f32 to vector<3x2xf32>
    %49 = arith.addf %47, %48 : vector<3x2xf32>
    %cst_38 = arith.constant 5.000000e-01 : f32
    %50 = vector.broadcast %cst_38 : f32 to vector<3x2xf32>
    %51 = arith.mulf %50, %49 : vector<3x2xf32>
    %cst_39 = arith.constant dense<0.000000e+00> : vector<3xf32>
    %52 = vector.multi_reduction <add>, %51, %cst_39 [1] : vector<3x2xf32> to vector<3xf32>
    %53 = vector.shape_cast %52 : vector<3xf32> to vector<3x1xf32>
    %cst_40 = arith.constant 5.000000e-01 : f32
    %54 = vector.broadcast %cst_40 : f32 to vector<3x1xf32>
    %55 = arith.mulf %53, %54 : vector<3x1xf32>
    %c0_41 = arith.constant 0 : index
    %c0_42 = arith.constant 0 : index
    %c0_43 = arith.constant 0 : index
    %56 = vector.load %arg8[%c0_41, %c0_42, %c0_43] : memref<1x3x1xf32, #tpu.memory_space<vmem>>, vector<1x3x1xf32>
    %57 = vector.shape_cast %56 : vector<1x3x1xf32> to vector<3x1xf32>
    %58 = vector.shape_cast %55 : vector<3x1xf32> to vector<1x3x1xf32>
    tpu.vector_store %arg8[%c0_41, %c0_42, %c0_43], %58 {strides = array<i32>} : memref<1x3x1xf32, #tpu.memory_space<vmem>>, vector<1x3x1xf32>,
    return
  }
  func.func @transform_0(%arg0: i32) -> (i32, i32, i32) {
    %c0_i32 = arith.constant 0 : i32
    %c0_i32_0 = arith.constant 0 : i32
    %c0_i32_1 = arith.constant 0 : i32
    return %arg0, %c0_i32, %c0_i32_0 : i32, i32, i32
  }
  func.func @transform_1(%arg0: i32) -> (i32, i32) {
    %c0_i32 = arith.constant 0 : i32
    %c0_i32_0 = arith.constant 0 : i32
    %c0_i32_1 = arith.constant 0 : i32
    return %c0_i32, %c0_i32_0 : i32, i32
  }
  func.func @transform_2(%arg0: i32) -> (i32, i32) {
    %c0_i32 = arith.constant 0 : i32
    %c0_i32_0 = arith.constant 0 : i32
    %c0_i32_1 = arith.constant 0 : i32
    return %c0_i32, %c0_i32_0 : i32, i32
  }
  func.func @transform_3(%arg0: i32) -> (i32, i32) {
    %c0_i32 = arith.constant 0 : i32
    %c0_i32_0 = arith.constant 0 : i32
    %c0_i32_1 = arith.constant 0 : i32
    return %c0_i32, %c0_i32_0 : i32, i32
  }
  func.func @transform_4(%arg0: i32) -> (i32, i32) {
    %c0_i32 = arith.constant 0 : i32
    %c0_i32_0 = arith.constant 0 : i32
    %c0_i32_1 = arith.constant 0 : i32
    return %c0_i32, %c0_i32_0 : i32, i32
  }
  func.func @transform_5(%arg0: i32) -> (i32, i32) {
    %c0_i32 = arith.constant 0 : i32
    %c0_i32_0 = arith.constant 0 : i32
    %c0_i32_1 = arith.constant 0 : i32
    return %c0_i32, %c0_i32_0 : i32, i32
  }
  func.func @transform_6(%arg0: i32) -> (i32, i32) {
    %c0_i32 = arith.constant 0 : i32
    %c0_i32_0 = arith.constant 0 : i32
    %c0_i32_1 = arith.constant 0 : i32
    return %c0_i32, %c0_i32_0 : i32, i32
  }
  func.func @transform_7(%arg0: i32) -> (i32, i32, i32) {
    %c0_i32 = arith.constant 0 : i32
    %c0_i32_0 = arith.constant 0 : i32
    %c0_i32_1 = arith.constant 0 : i32
    return %arg0, %c0_i32, %c0_i32_0 : i32, i32, i32
  }
}

</mosaic_0001>

<llo_original>
// kernel: cnn1_classifier_forward.1
$region0: #{cnn1_classifier_forward.1}
  #allocation0 [shape = 'u32[]', space=smem, size = 0x4, offset = 0x4, fixed_abs, tag = 'smem constant byte address 0x4 - core index']
  #allocation1 [shape = 'u32[144,128]{1,0:T(1,128)}', space=vmem, size = 0x12000, scoped, tag = 'internal scratch']
  #allocation2 [shape = 'f32[40,10]{1,0:T(8,128)}', space=vmem, size = 0x5000, scoped, tag = 'scratch operand']
  #allocation3 [shape = 'f32[80,2]{1,0:T(8,128)}', space=vmem, size = 0xa000, scoped, tag = 'scratch operand']
  %s0 = inlined_call_operand.vmem [shape: bf16[2,20,50], index: 0, kind: input, shape index: {}]
  %s1 = inlined_call_operand.vmem [shape: bf16[8,20], index: 1, kind: input, shape index: {}]
  %s2 = inlined_call_operand.vmem [shape: f32[8,1], index: 2, kind: input, shape index: {}]
  %s3 = inlined_call_operand.vmem [shape: bf16[16,40], index: 3, kind: input, shape index: {}]
  %s4 = inlined_call_operand.vmem [shape: f32[16,1], index: 4, kind: input, shape index: {}]
  %s5 = inlined_call_operand.vmem [shape: bf16[3,80], index: 5, kind: input, shape index: {}]
  %s6 = inlined_call_operand.vmem [shape: f32[3,1], index: 6, kind: input, shape index: {}]
  %s7 = inlined_call_operand.vmem [shape: f32[2,3,1], index: 7, kind: output, shape index: {}]
  %s8 = sld [smem:[#allocation0]]
  $region61: #{cnn1_classifier_forward.1} parent=0
    _
  %s10 = ssub.s32 1, %s8
  %s11 = scalar_select 0, %s10, %s8
  loop: start=0, step=1, limit=4
  $region2: #{cnn1_classifier_forward.1} parent=0 // loop_pre_header
    _
  $region3: #{cnn1_classifier_forward.1} parent=0 // loop_header
    %s13 = sphi 0, %s17
    %p14 = scmp.ge.s32.totalorder %s13, 4
    %s23 = sphi 0, %s25
    %s26 = sphi 0, %s23
    %s27 = sphi 0, %s26
    %s43 = sphi 0, %s27
    %s47 = sphi 0, %s47
    %s49 = sphi 0, %s47
    %s50 = sphi 0, %s49
    %s64 = sphi 0, %s50
    %s68 = sphi 0, %s68
    %s70 = sphi 0, %s68
    %s71 = sphi 0, %s70
    %s85 = sphi 0, %s71
    %s89 = sphi 0, %s89
    %s91 = sphi 0, %s89
    %s92 = sphi 0, %s91
    %s106 = sphi 0, %s92
    %s110 = sphi 0, %s110
    %s112 = sphi 0, %s110
    %s113 = sphi 0, %s112
    %s127 = sphi 0, %s113
    %s131 = sphi 0, %s131
    %s133 = sphi 0, %s131
    %s134 = sphi 0, %s133
    %s148 = sphi 0, %s134
    %s152 = sphi 0, %s152
    %s154 = sphi 0, %s152
    %s155 = sphi 0, %s154
    %s169 = sphi 0, %s155
    %s175 = sphi 0, %s177
    %s178 = sphi 0, %s175
    %s179 = sphi 0, %s178
    %s195 = sphi 0, %s179
  $region4: #{cnn1_classifier_forward.1} parent=0 // loop_header_branch
    %16 = sbr.rel (%p14) target = $region8
  $region5: #{cnn1_classifier_forward.1} parent=0 // loop_body
    %s18 = ssub.s32 %s13, 1
    %s19 = ssub.s32 %s13, 2
    %s20 = sadd.s32 %s13, 1
    %s21 = ssub.s32 %s13, %s20
    %p22 = scmp.eq.s32.totalorder %s21, 0
    %s24 = sadd.s32 %s23, 1
    %s25 = scalar_select %p22, %s23, %s24
    %p28 = pneg %p22
    %p29 = scmp.eq.s32.totalorder %s13, 1
    %p30 = por %p28, %p29
    %p31 = scmp.ne.s32.totalorder %s23, %s26
    %p32 = scmp.eq.s32.totalorder %s13, 0
    %p33 = por %p31, %p32
    %p34 = scmp.ne.s32.totalorder %s23, %s26
    %p35 = scmp.eq.s32.totalorder %s18, 1
    %p36 = por %p34, %p35
    %p37 = scmp.ne.s32.totalorder %s26, %s27
    %p38 = scmp.eq.s32.totalorder %s18, 0
    %p39 = por %p37, %p38
    %p40 = scmp.ne.s32.totalorder %s26, %s27
    %p41 = scmp.eq.s32.totalorder %s19, 1
    %p42 = por %p40, %p41
    %p44 = scmp.ne.s32.totalorder %s27, %s43
    %p45 = scmp.eq.s32.totalorder %s19, 0
    %p46 = por %p44, %p45
    %s48 = sadd.s32 %s47, 1
    %p51 = scmp.eq.s32.totalorder %s13, 1
    %p52 = scmp.ne.s32.totalorder %s47, %s49
    %p53 = scmp.eq.s32.totalorder %s13, 0
    %p54 = por %p52, %p53
    %p55 = scmp.ne.s32.totalorder %s47, %s49
    %p56 = scmp.eq.s32.totalorder %s18, 1
    %p57 = por %p55, %p56
    %p58 = scmp.ne.s32.totalorder %s49, %s50
    %p59 = scmp.eq.s32.totalorder %s18, 0
    %p60 = por %p58, %p59
    %p61 = scmp.ne.s32.totalorder %s49, %s50
    %p62 = scmp.eq.s32.totalorder %s19, 1
    %p63 = por %p61, %p62
    %p65 = scmp.ne.s32.totalorder %s50, %s64
    %p66 = scmp.eq.s32.totalorder %s19, 0
    %p67 = por %p65, %p66
    %s69 = sadd.s32 %s68, 1
    %p72 = scmp.eq.s32.totalorder %s13, 1
    %p73 = scmp.ne.s32.totalorder %s68, %s70
    %p74 = scmp.eq.s32.totalorder %s13, 0
    %p75 = por %p73, %p74
    %p76 = scmp.ne.s32.totalorder %s68, %s70
    %p77 = scmp.eq.s32.totalorder %s18, 1
    %p78 = por %p76, %p77
    %p79 = scmp.ne.s32.totalorder %s70, %s71
    %p80 = scmp.eq.s32.totalorder %s18, 0
    %p81 = por %p79, %p80
    %p82 = scmp.ne.s32.totalorder %s70, %s71
    %p83 = scmp.eq.s32.totalorder %s19, 1
    %p84 = por %p82, %p83
    %p86 = scmp.ne.s32.totalorder %s71, %s85
    %p87 = scmp.eq.s32.totalorder %s19, 0
    %p88 = por %p86, %p87
    %s90 = sadd.s32 %s89, 1
    %p93 = scmp.eq.s32.totalorder %s13, 1
    %p94 = scmp.ne.s32.totalorder %s89, %s91
    %p95 = scmp.eq.s32.totalorder %s13, 0
    %p96 = por %p94, %p95
    %p97 = scmp.ne.s32.totalorder %s89, %s91
    %p98 = scmp.eq.s32.totalorder %s18, 1
    %p99 = por %p97, %p98
    %p100 = scmp.ne.s32.totalorder %s91, %s92
    %p101 = scmp.eq.s32.totalorder %s18, 0
    %p102 = por %p100, %p101
    %p103 = scmp.ne.s32.totalorder %s91, %s92
    %p104 = scmp.eq.s32.totalorder %s19, 1
    %p105 = por %p103, %p104
    %p107 = scmp.ne.s32.totalorder %s92, %s106
    %p108 = scmp.eq.s32.totalorder %s19, 0
    %p109 = por %p107, %p108
    %s111 = sadd.s32 %s110, 1
    %p114 = scmp.eq.s32.totalorder %s13, 1
    %p115 = scmp.ne.s32.totalorder %s110, %s112
    %p116 = scmp.eq.s32.totalorder %s13, 0
    %p117 = por %p115, %p116
    %p118 = scmp.ne.s32.totalorder %s110, %s112
    %p119 = scmp.eq.s32.totalorder %s18, 1
    %p120 = por %p118, %p119
    %p121 = scmp.ne.s32.totalorder %s112, %s113
    %p122 = scmp.eq.s32.totalorder %s18, 0
    %p123 = por %p121, %p122
    %p124 = scmp.ne.s32.totalorder %s112, %s113
    %p125 = scmp.eq.s32.totalorder %s19, 1
    %p126 = por %p124, %p125
    %p128 = scmp.ne.s32.totalorder %s113, %s127
    %p129 = scmp.eq.s32.totalorder %s19, 0
    %p130 = por %p128, %p129
    %s132 = sadd.s32 %s131, 1
    %p135 = scmp.eq.s32.totalorder %s13, 1
    %p136 = scmp.ne.s32.totalorder %s131, %s133
    %p137 = scmp.eq.s32.totalorder %s13, 0
    %p138 = por %p136, %p137
    %p139 = scmp.ne.s32.totalorder %s131, %s133
    %p140 = scmp.eq.s32.totalorder %s18, 1
    %p141 = por %p139, %p140
    %p142 = scmp.ne.s32.totalorder %s133, %s134
    %p143 = scmp.eq.s32.totalorder %s18, 0
    %p144 = por %p142, %p143
    %p145 = scmp.ne.s32.totalorder %s133, %s134
    %p146 = scmp.eq.s32.totalorder %s19, 1
    %p147 = por %p145, %p146
    %p149 = scmp.ne.s32.totalorder %s134, %s148
    %p150 = scmp.eq.s32.totalorder %s19, 0
    %p151 = por %p149, %p150
    %s153 = sadd.s32 %s152, 1
    %p156 = scmp.eq.s32.totalorder %s13, 1
    %p157 = scmp.ne.s32.totalorder %s152, %s154
    %p158 = scmp.eq.s32.totalorder %s13, 0
    %p159 = por %p157, %p158
    %p160 = scmp.ne.s32.totalorder %s152, %s154
    %p161 = scmp.eq.s32.totalorder %s18, 1
    %p162 = por %p160, %p161
    %p163 = scmp.ne.s32.totalorder %s154, %s155
    %p164 = scmp.eq.s32.totalorder %s18, 0
    %p165 = por %p163, %p164
    %p166 = scmp.ne.s32.totalorder %s154, %s155
    %p167 = scmp.eq.s32.totalorder %s19, 1
    %p168 = por %p166, %p167
    %p170 = scmp.ne.s32.totalorder %s155, %s169
    %p171 = scmp.eq.s32.totalorder %s19, 0
    %p172 = por %p170, %p171
    %s173 = ssub.s32 %s13, %s20
    %p174 = scmp.eq.s32.totalorder %s173, 0
    %s176 = sadd.s32 %s175, 1
    %s177 = scalar_select %p174, %s175, %s176
    %p180 = pneg %p174
    %p181 = scmp.eq.s32.totalorder %s13, 1
    %p182 = por %p180, %p181
    %p183 = scmp.ne.s32.totalorder %s175, %s178
    %p184 = scmp.eq.s32.totalorder %s13, 0
    %p185 = por %p183, %p184
    %p186 = scmp.ne.s32.totalorder %s175, %s178
    %p187 = scmp.eq.s32.totalorder %s18, 1
    %p188 = por %p186, %p187
    %p189 = scmp.ne.s32.totalorder %s178, %s179
    %p190 = scmp.eq.s32.totalorder %s18, 0
    %p191 = por %p189, %p190
    %p192 = scmp.ne.s32.totalorder %s178, %s179
    %p193 = scmp.eq.s32.totalorder %s19, 1
    %p194 = por %p192, %p193
    %p196 = scmp.ne.s32.totalorder %s179, %s195
    %p197 = scmp.eq.s32.totalorder %s19, 0
    %p198 = por %p196, %p197
    %p199 = scmp.le.s32.totalorder 1, %s13
    %p200 = scmp.lt.s32.totalorder %s13, 3
    %p201 = pnand %p199, %p200
    %p202 = pneg %p201
    // Predicated region
    $region9: #{cnn1_classifier_forward.1} parent=5 // pred_check
      _
    $region10: #{cnn1_classifier_forward.1} parent=5 // pred_check_branch
      %204 = sbr.rel (%p201) target = $region12
    $region11: #{cnn1_classifier_forward.1} parent=5 // pred_region
      %s205 = ssub.s32 %s13, 1
      // Predicated region
      $region13: #{cnn1_classifier_forward.1} parent=11 // pred_check
        %p206 = pneg %p60
      $region14: #{cnn1_classifier_forward.1} parent=11 // pred_check_branch
        %208 = sbr.rel (%p206) target = $region16
      $region15: #{cnn1_classifier_forward.1} parent=11 // pred_region
        _
      $region16: #{cnn1_classifier_forward.1} parent=11 // pred_fallthru
        _
      // Predicated region
      $region17: #{cnn1_classifier_forward.1} parent=11 // pred_check
        %p209 = pneg %p81
      $region18: #{cnn1_classifier_forward.1} parent=11 // pred_check_branch
        %211 = sbr.rel (%p209) target = $region20
      $region19: #{cnn1_classifier_forward.1} parent=11 // pred_region
        _
      $region20: #{cnn1_classifier_forward.1} parent=11 // pred_fallthru
        _
      // Predicated region
      $region21: #{cnn1_classifier_forward.1} parent=11 // pred_check
        %p212 = pneg %p102
      $region22: #{cnn1_classifier_forward.1} parent=11 // pred_check_branch
        %214 = sbr.rel (%p212) target = $region24
      $region23: #{cnn1_classifier_forward.1} parent=11 // pred_region
        _
      $region24: #{cnn1_classifier_forward.1} parent=11 // pred_fallthru
        _
      // Predicated region
      $region25: #{cnn1_classifier_forward.1} parent=11 // pred_check
        %p215 = pneg %p123
      $region26: #{cnn1_classifier_forward.1} parent=11 // pred_check_branch
        %217 = sbr.rel (%p215) target = $region28
      $region27: #{cnn1_classifier_forward.1} parent=11 // pred_region
        _
      $region28: #{cnn1_classifier_forward.1} parent=11 // pred_fallthru
        _
      // Predicated region
      $region29: #{cnn1_classifier_forward.1} parent=11 // pred_check
        %p218 = pneg %p144
      $region30: #{cnn1_classifier_forward.1} parent=11 // pred_check_branch
        %220 = sbr.rel (%p218) target = $region32
      $region31: #{cnn1_classifier_forward.1} parent=11 // pred_region
        _
      $region32: #{cnn1_classifier_forward.1} parent=11 // pred_fallthru
        _
      // Predicated region
      $region33: #{cnn1_classifier_forward.1} parent=11 // pred_check
        %p221 = pneg %p165
      $region34: #{cnn1_classifier_forward.1} parent=11 // pred_check_branch
        %223 = sbr.rel (%p221) target = $region36
      $region35: #{cnn1_classifier_forward.1} parent=11 // pred_region
        _
      $region36: #{cnn1_classifier_forward.1} parent=11 // pred_fallthru
        _
    $region12: #{cnn1_classifier_forward.1} parent=5 // pred_fallthru
      _
    %p224 = scmp.lt.s32.totalorder %s13, 2
    // Predicated region
    $region37: #{cnn1_classifier_forward.1} parent=5 // pred_check
      %p225 = pneg %p224
    $region38: #{cnn1_classifier_forward.1} parent=5 // pred_check_branch
      %227 = sbr.rel (%p225) target = $region40
    $region39: #{cnn1_classifier_forward.1} parent=5 // pred_region
      // Predicated region
      $region41: #{cnn1_classifier_forward.1} parent=39 // pred_check
        %p228 = pneg %p33
      $region42: #{cnn1_classifier_forward.1} parent=39 // pred_check_branch
        %230 = sbr.rel (%p228) target = $region44
      $region43: #{cnn1_classifier_forward.1} parent=39 // pred_region
        %p231 = scmp.lt.s32.totalorder %s13, 1
        %s232 = scalar_select %p231, %s13, 1
        %s233 = smul.addr %s232, 3
        %s234 = smul.addr %s233, 4
        %s235 = scalar_lea.vmem %s0, %s234
      $region44: #{cnn1_classifier_forward.1} parent=39 // pred_fallthru
        _
    $region40: #{cnn1_classifier_forward.1} parent=5 // pred_fallthru
      _
    %p236 = scmp.le.s32.totalorder 1, %s13
    %p237 = scmp.lt.s32.totalorder %s13, 3
    %p238 = pnand %p236, %p237
    %p239 = pneg %p238
    // Predicated region
    $region45: #{cnn1_classifier_forward.1} parent=5 // pred_check
      _
    $region46: #{cnn1_classifier_forward.1} parent=5 // pred_check_branch
      %241 = sbr.rel (%p238) target = $region48
    $region47: #{cnn1_classifier_forward.1} parent=5 // pred_region
      %s242 = ssub.s32 %s13, 1
      %p243 = scmp.lt.s32.totalorder %s18, 1
      %s244 = scalar_select %p243, %s18, 1
      %s245 = smul.addr %s244, 3
      %s246 = smul.addr %s245, 4
      %s247 = scalar_lea.vmem %s0, %s246
      %p248 = pneg %p39
      %p249 = pneg %p36
      %p250 = pneg %p60
      %p251 = pneg %p57
      %p252 = pneg %p81
      %p253 = pneg %p78
      %p254 = pneg %p102
      %p255 = pneg %p99
      %p256 = pneg %p123
      %p257 = pneg %p120
      %p258 = pneg %p144
      %p259 = pneg %p141
      %p260 = pneg %p165
      %p261 = pneg %p162
      %p262 = pneg %p191
      %p263 = pneg %p188
      %p264 = scmp.lt.s32.totalorder %s18, 1
      %s265 = scalar_select %p264, %s18, 1
      %s266 = smul.addr %s265, 4
      %s267 = scalar_lea.vmem %s7, %s266
      %p268 = scmp.lt.s32.totalorder %s18, 1
      %s269 = scalar_select %p268, %s18, 1
      %s270 = smul.addr %s269, 3
      %s271 = smul.addr %s270, 4
      %s272 = scalar_lea.vmem %s0, %s271
      %p273 = scmp.lt.s32.totalorder %s18, 1
      %s274 = scalar_select %p273, %s18, 1
      %s275 = smul.addr %s274, 4
      %s276 = scalar_lea.vmem %s7, %s275
      %v278 = vld [vmem:[%s272] sm:$0xf]
      %v279 = vld [vmem:[%s272 + $0x4] sm:$0xf]
      %v280 = vld [vmem:[%s272 + $0x8] sm:$0x3]
      %v281 = vld [vmem:[%s1] sm:$0xf]
      %v282 = vld [vmem:[%s2] sm:$0xff]
      %284 = vset.pattern.permute.xlu0 0
      %285 = vperm.xlu0 %284, %v282
      %v286 = vpop.permute.xlu0 %285
      %v291 = vunpack.c.l.b16 %v278
      %v292 = vunpack.c.l.b16 %v279
      %v293 = vunpack.c.l.b16 %v280
      %v294 = vpack.c.b16 %v292, %v291
      %v295 = vpack.c.b16 %v293, %v293
      %vm297 = vcmask 162816
      %v299 = vsel %vm297, %v281, 0
      %vm301 = vcmask 1041408
      %v303 = vsel %vm301, %v295, 0
      %305 = vmatprep.subr.bf16.mxu0 0
      %306 = vmatpush1.bf16.msra.mxu0 0
      %307 = vmatprep.subr.bf16.mxu0 0
      %308 = vmatpush1.bf16.msra.mxu0 0
      %309 = vmatprep.subr.bf16.mxu0 0
      %310 = vmatpush1.bf16.msra.mxu0 0
      %311 = vmatprep.subr.bf16.mxu0 0
      %312 = vmatpush1.bf16.msra.mxu0 0
      %313 = vmatprep.subr.bf16.mxu0 0
      %314 = vmatpush1.bf16.msra.mxu0 0
      %315 = vmatprep.subr.bf16.mxu0 0
      %316 = vmatpush1.bf16.msra.mxu0 0
      %317 = vmatprep.subr.bf16.mxu0 0
      %318 = vmatpush1.bf16.msra.mxu0 %v303
      %319 = vmatprep.subr.bf16.mxu0 0
      %320 = vmatpush1.bf16.msra.mxu0 %v294
      %321 = vmatprep.subr.bf16.mxu0 0
      %322 = vmatpush2.bf16.msra.mxu0 0
      %323 = vmatprep.subr.bf16.mxu0 0
      %324 = vmatpush2.bf16.msra.mxu0 0
      %325 = vmatprep.subr.bf16.mxu0 0
      %326 = vmatpush2.bf16.msra.mxu0 0
      %327 = vmatprep.subr.bf16.mxu0 0
      %328 = vmatpush2.bf16.msra.mxu0 0
      %329 = vmatprep.subr.bf16.mxu0 0
      %330 = vmatpush2.bf16.msra.mxu0 0
      %331 = vmatprep.subr.bf16.mxu0 0
      %332 = vmatpush2.bf16.msra.mxu0 0
      %333 = vmatprep.subr.bf16.mxu0 0
      %334 = vmatpush2.bf16.msra.mxu0 0
      %335 = vmatprep.subr.bf16.mxu0 0
      %336 = vmatpush2.bf16.msra.mxu0 0
      %337 = vmatprep.mubr.bf16.mxu0 0
      %338 = vmatmul.mubr.bf16.gmra.mxu0 %v299
      %v339 = vpop.f32.mrf.mxu0
      %v340 = vadd.f32 %v286, %v339
      %v341 = vpop.f32.mrf.mxu0
      %v342 = vpop.f32.mrf.mxu0
      %v343 = vpop.f32.mrf.mxu0
      %344 = vdwg.mxu0
      %v345 = vmax.f32 %v340, 0.0
      %vm346 = vcmask 80896
      %347 = vst.msk [vmem:[#allocation2] sm:$0xff] %vm346, %v345
      %349 = vrot.lane.b32.xlu0 %v345, 118
      %v350 = vpop.permute.xlu0 %349
      %352 = vst.msk [vmem:[#allocation2 + $0x8] sm:$0xff] %vm346, %v350
      %353 = vrot.lane.b32.xlu0 %v345, 108
      %v354 = vpop.permute.xlu0 %353
      %356 = vst.msk [vmem:[#allocation2 + $0x10] sm:$0xff] %vm346, %v354
      %357 = vrot.lane.b32.xlu0 %v345, 98
      %v358 = vpop.permute.xlu0 %357
      %360 = vst.msk [vmem:[#allocation2 + $0x18] sm:$0xff] %vm346, %v358
      %361 = vrot.lane.b32.xlu0 %v345, 88
      %v362 = vpop.permute.xlu0 %361
      %364 = vst.msk [vmem:[#allocation2 + $0x20] sm:$0xff] %vm346, %v362
      %v365 = vld [vmem:[#allocation2] sm:$0xff]
      %v366 = vld [vmem:[#allocation2 + $0x8] sm:$0xff]
      %v367 = vld [vmem:[#allocation2 + $0x10] sm:$0xff]
      %v368 = vld [vmem:[#allocation2 + $0x18] sm:$0xff]
      %v369 = vld [vmem:[#allocation2 + $0x20] sm:$0xff]
      %v370 = vpack.c.bf16 %v366, %v365
      %v371 = vpack.c.bf16 %v368, %v367
      %v372 = vpack.c.bf16 %v369, %v369
      %v373 = vld [vmem:[%s3] sm:$0xf]
      %v374 = vld [vmem:[%s3 + $0x4] sm:$0xf]
      %v375 = vld [vmem:[%s4] sm:$0xff]
      %v376 = vld [vmem:[%s4 + $0x8] sm:$0xff]
      %378 = vset.pattern.permute.xlu0 0
      %379 = vperm.xlu0 %378, %v375
      %v380 = vpop.permute.xlu0 %379
      %383 = vset.pattern.permute.xlu0 0
      %384 = vperm.xlu0 %383, %v376
      %v385 = vpop.permute.xlu0 %384
      %v389 = vunpack.c.l.b16 %v373
      %v390 = vunpack.c.l.b16 %v374
      %v391 = vpack.c.b16 %v390, %v389
      %vm392 = vcmask 326656
      %v394 = vsel %vm392, %v391, 0
      %vm396 = vcmask 1043456
      %v398 = vsel %vm396, %v372, 0
      %400 = vmatprep.subr.bf16.mxu0 0
      %401 = vmatpush1.bf16.msra.mxu0 0
      %402 = vmatprep.subr.bf16.mxu0 0
      %403 = vmatpush1.bf16.msra.mxu0 0
      %404 = vmatprep.subr.bf16.mxu0 0
      %405 = vmatpush1.bf16.msra.mxu0 0
      %406 = vmatprep.subr.bf16.mxu0 0
      %407 = vmatpush1.bf16.msra.mxu0 0
      %408 = vmatprep.subr.bf16.mxu0 0
      %409 = vmatpush1.bf16.msra.mxu0 0
      %410 = vmatprep.subr.bf16.mxu0 0
      %411 = vmatpush1.bf16.msra.mxu0 %v398
      %412 = vmatprep.subr.bf16.mxu0 0
      %413 = vmatpush1.bf16.msra.mxu0 %v371
      %414 = vmatprep.subr.bf16.mxu0 0
      %415 = vmatpush1.bf16.msra.mxu0 %v370
      %416 = vmatprep.subr.bf16.mxu0 0
      %417 = vmatpush2.bf16.msra.mxu0 0
      %418 = vmatprep.subr.bf16.mxu0 0
      %419 = vmatpush2.bf16.msra.mxu0 0
      %420 = vmatprep.subr.bf16.mxu0 0
      %421 = vmatpush2.bf16.msra.mxu0 0
      %422 = vmatprep.subr.bf16.mxu0 0
      %423 = vmatpush2.bf16.msra.mxu0 0
      %424 = vmatprep.subr.bf16.mxu0 0
      %425 = vmatpush2.bf16.msra.mxu0 0
      %426 = vmatprep.subr.bf16.mxu0 0
      %427 = vmatpush2.bf16.msra.mxu0 0
      %428 = vmatprep.subr.bf16.mxu0 0
      %429 = vmatpush2.bf16.msra.mxu0 0
      %430 = vmatprep.subr.bf16.mxu0 0
      %431 = vmatpush2.bf16.msra.mxu0 0
      %432 = vmatprep.mubr.bf16.mxu0 0
      %433 = vmatmul.mubr.bf16.gmra.mxu0 %v394
      %v434 = vpop.f32.mrf.mxu0
      %v435 = vadd.f32 %v380, %v434
      %v436 = vpop.f32.mrf.mxu0
      %v437 = vpop.f32.mrf.mxu0
      %v438 = vadd.f32 %v385, %v437
      %v439 = vpop.f32.mrf.mxu0
      %440 = vdwg.mxu0
      %v441 = vmax.f32 %v435, 0.0
      %v442 = vmax.f32 %v438, 0.0
      %vm443 = vcmask 15360
      %444 = vst.msk [vmem:[#allocation3] sm:$0xff] %vm443, %v441
      %445 = vst.msk [vmem:[#allocation3 + $0x8] sm:$0xff] %vm443, %v442
      %448 = vrot.lane.b32.xlu0 %v441, 126
      %v449 = vpop.permute.xlu0 %448
      %450 = vrot.lane.b32.xlu0 %v442, 126
      %v451 = vpop.permute.xlu0 %450
      %454 = vst.msk [vmem:[#allocation3 + $0x10] sm:$0xff] %vm443, %v449
      %455 = vst.msk [vmem:[#allocation3 + $0x18] sm:$0xff] %vm443, %v451
      %456 = vrot.lane.b32.xlu0 %v441, 124
      %v457 = vpop.permute.xlu0 %456
      %458 = vrot.lane.b32.xlu0 %v442, 124
      %v459 = vpop.permute.xlu0 %458
      %462 = vst.msk [vmem:[#allocation3 + $0x20] sm:$0xff] %vm443, %v457
      %463 = vst.msk [vmem:[#allocation3 + $0x28] sm:$0xff] %vm443, %v459
      %464 = vrot.lane.b32.xlu0 %v441, 122
      %v465 = vpop.permute.xlu0 %464
      %466 = vrot.lane.b32.xlu0 %v442, 122
      %v467 = vpop.permute.xlu0 %466
      %470 = vst.msk [vmem:[#allocation3 + $0x30] sm:$0xff] %vm443, %v465
      %471 = vst.msk [vmem:[#allocation3 + $0x38] sm:$0xff] %vm443, %v467
      %472 = vrot.lane.b32.xlu0 %v441, 120
      %v473 = vpop.permute.xlu0 %472
      %474 = vrot.lane.b32.xlu0 %v442, 120
      %v475 = vpop.permute.xlu0 %474
      %478 = vst.msk [vmem:[#allocation3 + $0x40] sm:$0xff] %vm443, %v473
      %479 = vst.msk [vmem:[#allocation3 + $0x48] sm:$0xff] %vm443, %v475
      %v480 = vld [vmem:[#allocation3] sm:$0xff]
      %v481 = vld [vmem:[#allocation3 + $0x8] sm:$0xff]
      %v482 = vld [vmem:[#allocation3 + $0x10] sm:$0xff]
      %v483 = vld [vmem:[#allocation3 + $0x18] sm:$0xff]
      %v484 = vld [vmem:[#allocation3 + $0x20] sm:$0xff]
      %v485 = vld [vmem:[#allocation3 + $0x28] sm:$0xff]
      %v486 = vld [vmem:[#allocation3 + $0x30] sm:$0xff]
      %v487 = vld [vmem:[#allocation3 + $0x38] sm:$0xff]
      %v488 = vld [vmem:[#allocation3 + $0x40] sm:$0xff]
      %v489 = vld [vmem:[#allocation3 + $0x48] sm:$0xff]
      %v490 = vpack.c.bf16 %v481, %v480
      %v491 = vpack.c.bf16 %v483, %v482
      %v492 = vpack.c.bf16 %v485, %v484
      %v493 = vpack.c.bf16 %v487, %v486
      %v494 = vpack.c.bf16 %v489, %v488
      %v495 = vld [vmem:[%s5] sm:$0x3]
      %v496 = vld [vmem:[%s6] sm:$0x7]
      %498 = vset.pattern.permute.xlu0 0
      %499 = vperm.xlu0 %498, %v496
      %v500 = vpop.permute.xlu0 %499
      %vm502 = vcmask 654336
      %v504 = vsel %vm502, %v495, 0
      %506 = vmatprep.subr.bf16.mxu0 0
      %507 = vmatpush1.bf16.msra.mxu0 0
      %508 = vmatprep.subr.bf16.mxu0 0
      %509 = vmatpush1.bf16.msra.mxu0 0
      %510 = vmatprep.subr.bf16.mxu0 0
      %511 = vmatpush1.bf16.msra.mxu0 0
      %512 = vmatprep.subr.bf16.mxu0 0
      %513 = vmatpush1.bf16.msra.mxu0 %v494
      %514 = vmatprep.subr.bf16.mxu0 0
      %515 = vmatpush1.bf16.msra.mxu0 %v493
      %516 = vmatprep.subr.bf16.mxu0 0
      %517 = vmatpush1.bf16.msra.mxu0 %v492
      %518 = vmatprep.subr.bf16.mxu0 0
      %519 = vmatpush1.bf16.msra.mxu0 %v491
      %520 = vmatprep.subr.bf16.mxu0 0
      %521 = vmatpush1.bf16.msra.mxu0 %v490
      %522 = vmatprep.subr.bf16.mxu0 0
      %523 = vmatpush2.bf16.msra.mxu0 0
      %524 = vmatprep.subr.bf16.mxu0 0
      %525 = vmatpush2.bf16.msra.mxu0 0
      %526 = vmatprep.subr.bf16.mxu0 0
      %527 = vmatpush2.bf16.msra.mxu0 0
      %528 = vmatprep.subr.bf16.mxu0 0
      %529 = vmatpush2.bf16.msra.mxu0 0
      %530 = vmatprep.subr.bf16.mxu0 0
      %531 = vmatpush2.bf16.msra.mxu0 0
      %532 = vmatprep.subr.bf16.mxu0 0
      %533 = vmatpush2.bf16.msra.mxu0 0
      %534 = vmatprep.subr.bf16.mxu0 0
      %535 = vmatpush2.bf16.msra.mxu0 0
      %536 = vmatprep.subr.bf16.mxu0 0
      %537 = vmatpush2.bf16.msra.mxu0 0
      %538 = vmatprep.mubr.bf16.mxu0 0
      %539 = vmatmul.mubr.bf16.gmra.mxu0 %v504
      %v540 = vpop.f32.mrf.mxu0
      %v541 = vadd.f32 %v500, %v540
      %v542 = vpop.f32.mrf.mxu0
      %v543 = vpop.f32.mrf.mxu0
      %v544 = vpop.f32.mrf.mxu0
      %545 = vdwg.mxu0
      %v546 = vmul.f32 %v541, 0.5
      %v547 = vtanh.pop %v546
      %v548 = vadd.f32 %v547, 1.0
      %v549 = vmul.f32 %v548, 0.5
      %vm550 = vcmask 10240
      %v551 = vsel %vm550, %v549, 0.0
      %552 = vadd.xlane.f32.xlu0 %v551
      %v553 = vpop.xlane.xlu0 %552
      %v554 = vmul.f32 %v553, 0.5
      %vm555 = vcmask 2048
      %556 = vst.msk [vmem:[%s276] sm:$0x7] %vm555, %v554
      %p557 = scmp.lt.s32.totalorder %s18, 1
      %s558 = scalar_select %p557, %s18, 1
      %s559 = smul.addr %s558, 4
      %s560 = scalar_lea.vmem %s7, %s559
      // Predicated region
      $region49: #{cnn1_classifier_forward.1} parent=47 // pred_check
        %p561 = pneg %p188
      $region50: #{cnn1_classifier_forward.1} parent=47 // pred_check_branch
        %563 = sbr.rel (%p561) target = $region52
      $region51: #{cnn1_classifier_forward.1} parent=47 // pred_region
        _
      $region52: #{cnn1_classifier_forward.1} parent=47 // pred_fallthru
        _
    $region48: #{cnn1_classifier_forward.1} parent=5 // pred_fallthru
      _
    %p564 = scmp.le.s32.totalorder 2, %s13
    // Predicated region
    $region53: #{cnn1_classifier_forward.1} parent=5 // pred_check
      %p565 = pneg %p564
    $region54: #{cnn1_classifier_forward.1} parent=5 // pred_check_branch
      %567 = sbr.rel (%p565) target = $region56
    $region55: #{cnn1_classifier_forward.1} parent=5 // pred_region
      %s568 = ssub.s32 %s13, 2
      // Predicated region
      $region57: #{cnn1_classifier_forward.1} parent=55 // pred_check
        %p569 = pneg %p194
      $region58: #{cnn1_classifier_forward.1} parent=55 // pred_check_branch
        %571 = sbr.rel (%p569) target = $region60
      $region59: #{cnn1_classifier_forward.1} parent=55 // pred_region
        %p572 = scmp.lt.s32.totalorder %s19, 1
        %s573 = scalar_select %p572, %s19, 1
        %s574 = smul.addr %s573, 4
        %s575 = scalar_lea.vmem %s7, %s574
      $region60: #{cnn1_classifier_forward.1} parent=55 // pred_fallthru
        _
    $region56: #{cnn1_classifier_forward.1} parent=5 // pred_fallthru
      _
  $region6: #{cnn1_classifier_forward.1} parent=0 // loop_footer
    %s17 = sadd.s32 1, %s13
  $region7: #{cnn1_classifier_forward.1} parent=0 // loop_footer_branch
    %12 = sbr.rel target = $region3
  $region8: #{cnn1_classifier_forward.1} parent=0 // loop_exit
    _

</llo_original>
